<compile_context>
chip_gen: v5e
topology: v5e:2x2
jax: 0.10.0
libtpu: 0.0.40
codegen_flags: <defaults>
</compile_context>

<pallas_src>
import math

import jax
import jax.numpy as jnp
from jax.experimental import pallas as pl
from jax.experimental.pallas import tpu as pltpu

# Concrete CombinedLoss instance (the PyTorch module itself is generic config).
LOSS_WEIGHTS = {"mse": 0.5, "mae": 0.3, "smooth": 0.2}
SMOOTH_L1_BETA = 1.0  # PyTorch SmoothL1Loss default

LANES = 128
SUBLANES = 8


def _make_kernel(tile_rows, chunk_rows, ragged, valid_rows_last):
    """Build a fused streaming-reduction kernel specialized to static config."""
    n_chunks = tile_rows // chunk_rows
    half_over_beta = 0.5 / SMOOTH_L1_BETA   # folded: multiply instead of divide
    half_beta = 0.5 * SMOOTH_L1_BETA

    def kernel(p_ref, t_ref, out_ref):
        # p_ref / t_ref: (tile_rows, 128) VMEM tiles (input dtype).
        # out_ref: (1, 3, 8, 128) per-grid-step partial sums (f32).
        if ragged:
            last = pl.num_programs(0) - 1
            valid_rows = jnp.where(pl.program_id(0) == last,
                                   jnp.int32(valid_rows_last),
                                   jnp.int32(tile_rows))
            # Hoisted out of the chunk loop (JAX does not CSE broadcasts).
            row_iota = jax.lax.broadcasted_iota(jnp.int32, (chunk_rows, LANES), 0)

        def body(c, accs):
            a_sq, a_ad, a_sm = accs
            off = pl.multiple_of(c * chunk_rows, chunk_rows)
            p = p_ref[pl.ds(off, chunk_rows), :].astype(jnp.float32)
            t = t_ref[pl.ds(off, chunk_rows), :].astype(jnp.float32)
            if ragged:
                # Zero both operands past the valid rows (handles DMA-pad
                # garbage, incl. NaN/Inf): diff==0 contributes 0 to all terms.
                m = (row_iota + c * chunk_rows) < valid_rows
                p = jnp.where(m, p, 0.0)
                t = jnp.where(m, t, 0.0)
            d = p - t
            sq = d * d
            ad = jnp.abs(d)
            sm = jnp.where(ad < SMOOTH_L1_BETA, sq * half_over_beta, ad - half_beta)

            def fold(x):
                # (chunk,128) -> (chunk//8, 8, 128); summing axis 0 is pure
                # vreg-wise VPU adds (no cross-lane/sublane XLU work).
                return x.reshape(chunk_rows // SUBLANES, SUBLANES, LANES).sum(axis=0)

            return (a_sq + fold(sq), a_ad + fold(ad), a_sm + fold(sm))

        zero = jnp.zeros((SUBLANES, LANES), jnp.float32)
        a_sq, a_ad, a_sm = jax.lax.fori_loop(
            0, n_chunks, body, (zero, zero, zero), unroll=min(4, n_chunks))

        out_ref[0, 0] = a_sq      # MSE numerator (lane-parallel partials)
        out_ref[0, 1] = a_ad      # L1 numerator
        out_ref[0, 2] = a_sm      # SmoothL1 numerator

    return kernel


def _elementwise_terms(p, t):
    d = p - t
    sq = d * d
    ad = jnp.abs(d)
    sm = jnp.where(ad < SMOOTH_L1_BETA,
                   sq * (0.5 / SMOOTH_L1_BETA),
                   ad - 0.5 * SMOOTH_L1_BETA)
    return sq, ad, sm


def combined_loss(predictions, targets, *, tile_rows=None):
    """Returns dict with 'mse', 'mae', 'smooth', 'total' (scalar float32)."""
    assert predictions.shape == targets.shape
    n_total = int(predictions.size)
    assert n_total > 0

    itemsize = predictions.dtype.itemsize
    sub = SUBLANES * max(1, 4 // itemsize)           # 8 (f32) / 16 (bf16) / 32 (8-bit)
    if tile_rows is None:
        tile_rows = (4 * 1024 * 1024) // (LANES * itemsize)   # ~4 MiB per input block
    tile_rows = max(sub, (tile_rows // sub) * sub)

    p = predictions.reshape(-1)
    t = targets.reshape(-1)

    rows_main = ((n_total // LANES) // sub) * sub
    n_main = rows_main * LANES

    sums = jnp.zeros((3,), jnp.float32)

    if rows_main > 0:
        # Free reshape when n_main == n_total (lane/sublane aligned inputs —
        # the common case).  For lane-ragged inputs XLA may materialize the
        # aligned prefix once; the small remainder is handled with jnp below
        # (no full-tensor padding either way).
        p2d = (p if n_main == n_total else p[:n_main]).reshape(rows_main, LANES)
        t2d = (t if n_main == n_total else t[:n_main]).reshape(rows_main, LANES)

        tr = min(tile_rows, rows_main)
        if rows_main > sub:
            # Keep >= 2 grid steps so the "parallel" axis can shard across
            # both v7x TensorCores (negligible cost on single-TC v5e/v6e).
            half = -(-(rows_main // 2) // sub) * sub
            tr = min(tr, max(half, sub))
        num_tiles = -(-rows_main // tr)
        valid_last = rows_main - (num_tiles - 1) * tr
        ragged = valid_last != tr
        chunk = math.gcd(tr, 64)                     # rows per in-kernel chunk

        partials = pl.pallas_call(
            _make_kernel(tr, chunk, ragged, valid_last),
            out_shape=jax.ShapeDtypeStruct((num_tiles, 3, SUBLANES, LANES),
                                           jnp.float32),
            grid_spec=pl.GridSpec(
                grid=(num_tiles,),
                in_specs=[
                    pl.BlockSpec((tr, LANES), lambda i: (i, 0)),
                    pl.BlockSpec((tr, LANES), lambda i: (i, 0)),
                ],
                out_specs=pl.BlockSpec((1, 3, SUBLANES, LANES),
                                       lambda i: (i, 0, 0, 0)),
            ),
            compiler_params=pltpu.CompilerParams(
                # No cross-step state -> megacore-shardable grid axis.
                dimension_semantics=("parallel",),
                # ~16 MiB pipeline footprint; 40 MiB leaves headroom even on
                # v7x's 64 MiB VMEM while exceeding the v5e 16 MiB default.
                vmem_limit_bytes=40 * 1024 * 1024,
            ),
        )(p2d, t2d)

        # Single cross-tile / cross-sublane / cross-lane reduction, done once.
        sums = sums + jnp.sum(partials, axis=(0, 2, 3))

    if n_main != n_total:
        # Tiny lane-ragged remainder (< sub*128 + 128 elements) in plain jnp.
        sq, ad, sm = _elementwise_terms(p[n_main:].astype(jnp.float32),
                                        t[n_main:].astype(jnp.float32))
        sums = sums + jnp.stack([sq.sum(), ad.sum(), sm.sum()])

    inv_n = 1.0 / float(n_total)
    mse = sums[0] * inv_n
    mae = sums[1] * inv_n
    smooth = sums[2] * inv_n
    total = (LOSS_WEIGHTS["mse"] * mse
             + LOSS_WEIGHTS["mae"] * mae
             + LOSS_WEIGHTS["smooth"] * smooth)
    return {"mse": mse, "mae": mae, "smooth": smooth, "total": total}


def _reference(predictions, targets):
    d = predictions.astype(jnp.float32) - targets.astype(jnp.float32)
    ad = jnp.abs(d)
    mse = jnp.mean(d * d)
    mae = jnp.mean(ad)
    smooth = jnp.mean(jnp.where(ad < SMOOTH_L1_BETA,
                                0.5 * d * d / SMOOTH_L1_BETA,
                                ad - 0.5 * SMOOTH_L1_BETA))
    total = (LOSS_WEIGHTS["mse"] * mse + LOSS_WEIGHTS["mae"] * mae
             + LOSS_WEIGHTS["smooth"] * smooth)
    return {"mse": mse, "mae": mae, "smooth": smooth, "total": total}


if __name__ == "__main__":
    key = jax.random.PRNGKey(0)

    def run_case(k, shape, dtype=jnp.float32):
        kp, kt = jax.random.split(k)
        preds = jax.random.normal(kp, shape, dtype=jnp.float32).astype(dtype)
        tgts = jax.random.normal(kt, shape, dtype=jnp.float32).astype(dtype)
        out = combined_loss(preds, tgts)
        jax.block_until_ready(out)
        ref = _reference(preds, tgts)
        for name in ("mse", "mae", "smooth", "total"):
            assert jnp.allclose(out[name], ref[name], rtol=1e-5, atol=1e-5), (
                name, shape, out[name], ref[name])
        return out

    k1, k2, k3 = jax.random.split(key, 3)

    # batch=4, seq=16, hidden=33: lane-ragged tail (jnp remainder) + 2-step grid.
    run_case(k1, (4, 16, 33))
    # 40 aligned rows of 128: exercises the in-kernel masked (ragged-grid) path.
    run_case(k2, (1, 40, 128))
    # bf16 inputs: (16,128)-granular tiles, in-kernel f32 upcast.
    run_case(k3, (2, 16, 64), dtype=jnp.bfloat16)

    print("KERNEL_OK")
</pallas_src>

<mosaic_0001>
module attributes {stable_mosaic.version = 11 : i64} {
  func.func @kernel(%arg0: i32, %arg1: memref<8x128xf32, #tpu.memory_space<vmem>>, %arg2: memref<8x128xf32, #tpu.memory_space<vmem>>, %arg3: memref<1x3x8x128xf32, #tpu.memory_space<vmem>>) attributes {dimension_semantics = [#tpu.dimension_semantics<parallel>], iteration_bounds = array<i64: 2>, scalar_prefetch = 0 : i64, scratch_operands = 0 : i64, tpu.core_type = #tpu.core_type<tc>, window_params = [{transform_indices = @transform_0, window_bounds = array<i64: 8, 128>}, {transform_indices = @transform_1, window_bounds = array<i64: 8, 128>}, {transform_indices = @transform_2, window_bounds = array<i64: 1, 3, 8, 128>}]} {
    %cst = arith.constant 0.000000e+00 : f32
    %0 = vector.broadcast %cst : f32 to vector<8x128xf32>
    %c0_i32 = arith.constant 0 : i32
    %c8_i32 = arith.constant 8 : i32
    %1 = arith.muli %c0_i32, %c8_i32 : i32
    %2 = tpu.assume_multiple %1, 8 : i32
    %3 = arith.index_cast %2 : i32 to index
    %c0 = arith.constant 0 : index
    %4 = vector.load %arg1[%3, %c0] : memref<8x128xf32, #tpu.memory_space<vmem>>, vector<8x128xf32>
    %5 = arith.index_cast %2 : i32 to index
    %c0_0 = arith.constant 0 : index
    %6 = vector.load %arg2[%5, %c0_0] : memref<8x128xf32, #tpu.memory_space<vmem>>, vector<8x128xf32>
    %7 = arith.subf %4, %6 : vector<8x128xf32>
    %8 = arith.mulf %7, %7 : vector<8x128xf32>
    %9 = math.absf %7 : vector<8x128xf32>
    %cst_1 = arith.constant 1.000000e+00 : f32
    %10 = vector.broadcast %cst_1 : f32 to vector<8x128xf32>
    %11 = arith.cmpf olt, %9, %10 : vector<8x128xf32>
    %cst_2 = arith.constant 5.000000e-01 : f32
    %12 = vector.broadcast %cst_2 : f32 to vector<8x128xf32>
    %13 = arith.mulf %8, %12 : vector<8x128xf32>
    %cst_3 = arith.constant 5.000000e-01 : f32
    %14 = vector.broadcast %cst_3 : f32 to vector<8x128xf32>
    %15 = arith.subf %9, %14 : vector<8x128xf32>
    %16 = arith.select %11, %13, %15 : vector<8x128xi1>, vector<8x128xf32>
    %17 = vector.shape_cast %8 : vector<8x128xf32> to vector<1x8x128xf32>
    %cst_4 = arith.constant dense<0.000000e+00> : vector<8x128xf32>
    %18 = vector.multi_reduction <add>, %17, %cst_4 [0] : vector<1x8x128xf32> to vector<8x128xf32>
    %19 = arith.addf %0, %18 : vector<8x128xf32>
    %20 = vector.shape_cast %9 : vector<8x128xf32> to vector<1x8x128xf32>
    %cst_5 = arith.constant dense<0.000000e+00> : vector<8x128xf32>
    %21 = vector.multi_reduction <add>, %20, %cst_5 [0] : vector<1x8x128xf32> to vector<8x128xf32>
    %22 = arith.addf %0, %21 : vector<8x128xf32>
    %23 = vector.shape_cast %16 : vector<8x128xf32> to vector<1x8x128xf32>
    %cst_6 = arith.constant dense<0.000000e+00> : vector<8x128xf32>
    %24 = vector.multi_reduction <add>, %23, %cst_6 [0] : vector<1x8x128xf32> to vector<8x128xf32>
    %25 = arith.addf %0, %24 : vector<8x128xf32>
    %c1_i32 = arith.constant 1 : i32
    %c0_7 = arith.constant 0 : index
    %c0_8 = arith.constant 0 : index
    %c0_9 = arith.constant 0 : index
    %c0_10 = arith.constant 0 : index
    %26 = vector.load %arg3[%c0_7, %c0_8, %c0_9, %c0_10] : memref<1x3x8x128xf32, #tpu.memory_space<vmem>>, vector<1x1x8x128xf32>
    %27 = vector.shape_cast %26 : vector<1x1x8x128xf32> to vector<8x128xf32>
    %28 = vector.shape_cast %19 : vector<8x128xf32> to vector<1x1x8x128xf32>
    tpu.vector_store %arg3[%c0_7, %c0_8, %c0_9, %c0_10], %28 {strides = array<i32>} : memref<1x3x8x128xf32, #tpu.memory_space<vmem>>, vector<1x1x8x128xf32>,
    %c0_11 = arith.constant 0 : index
    %c1 = arith.constant 1 : index
    %c0_12 = arith.constant 0 : index
    %c0_13 = arith.constant 0 : index
    %29 = vector.load %arg3[%c0_11, %c1, %c0_12, %c0_13] : memref<1x3x8x128xf32, #tpu.memory_space<vmem>>, vector<1x1x8x128xf32>
    %30 = vector.shape_cast %29 : vector<1x1x8x128xf32> to vector<8x128xf32>
    %31 = vector.shape_cast %22 : vector<8x128xf32> to vector<1x1x8x128xf32>
    tpu.vector_store %arg3[%c0_11, %c1, %c0_12, %c0_13], %31 {strides = array<i32>} : memref<1x3x8x128xf32, #tpu.memory_space<vmem>>, vector<1x1x8x128xf32>,
    %c0_14 = arith.constant 0 : index
    %c2 = arith.constant 2 : index
    %c0_15 = arith.constant 0 : index
    %c0_16 = arith.constant 0 : index
    %32 = vector.load %arg3[%c0_14, %c2, %c0_15, %c0_16] : memref<1x3x8x128xf32, #tpu.memory_space<vmem>>, vector<1x1x8x128xf32>
    %33 = vector.shape_cast %32 : vector<1x1x8x128xf32> to vector<8x128xf32>
    %34 = vector.shape_cast %25 : vector<8x128xf32> to vector<1x1x8x128xf32>
    tpu.vector_store %arg3[%c0_14, %c2, %c0_15, %c0_16], %34 {strides = array<i32>} : memref<1x3x8x128xf32, #tpu.memory_space<vmem>>, vector<1x1x8x128xf32>,
    return
  }
  func.func @transform_0(%arg0: i32) -> (i32, i32) {
    %c0_i32 = arith.constant 0 : i32
    %c0_i32_0 = arith.constant 0 : i32
    return %arg0, %c0_i32 : i32, i32
  }
  func.func @transform_1(%arg0: i32) -> (i32, i32) {
    %c0_i32 = arith.constant 0 : i32
    %c0_i32_0 = arith.constant 0 : i32
    return %arg0, %c0_i32 : i32, i32
  }
  func.func @transform_2(%arg0: i32) -> (i32, i32, i32, i32) {
    %c0_i32 = arith.constant 0 : i32
    %c0_i32_0 = arith.constant 0 : i32
    %c0_i32_1 = arith.constant 0 : i32
    %c0_i32_2 = arith.constant 0 : i32
    return %arg0, %c0_i32, %c0_i32_0, %c0_i32_1 : i32, i32, i32, i32
  }
}

</mosaic_0001>

<llo_original>
// kernel: tpu_custom_call.1
$region0: #{tpu_custom_call.1}
  #allocation0 [shape = 'u32[]', space=smem, size = 0x4, offset = 0x4, fixed_abs, tag = 'smem constant byte address 0x4 - core index']
  #allocation1 [shape = 'u32[72,128]{1,0:T(1,128)}', space=vmem, size = 0x9000, scoped, tag = 'internal scratch']
  %s0 = inlined_call_operand.hbm [shape: f32[16,128], index: 0, kind: input, shape index: {}]
  %s1 = inlined_call_operand.hbm [shape: f32[16,128], index: 1, kind: input, shape index: {}]
  %s2 = inlined_call_operand.hbm [shape: f32[2,3,8,128], index: 2, kind: output, shape index: {}]
  %s3 = sld [smem:[#allocation0]]
  $region49: #{tpu_custom_call.1} parent=0
    _
  %s5 = ssub.s32 1, %s3
  %s6 = scalar_select 0, %s5, %s3
  $region1: #{tpu_custom_call.1} parent=0
    #allocation2 [shape = 'u8[8192]{0}', space=vmem, size = 0x2000, scoped, tag = 'input window, operand 0']
    #allocation3 [shape = 's32[2]{0}', space=sflag, size = 0x8, scoped, tag = 'scoped memory for tpu_custom_call.1']
    #allocation4 [shape = 's32[2]{0}', space=sflag, size = 0x8, scoped, tag = 'scoped memory for tpu_custom_call.1']
    #allocation5 [shape = 'u8[8192]{0}', space=vmem, size = 0x2000, scoped, tag = 'input window, operand 1']
    #allocation6 [shape = 's32[2]{0}', space=sflag, size = 0x8, scoped, tag = 'scoped memory for tpu_custom_call.1']
    #allocation7 [shape = 'u8[24576]{0}', space=vmem, size = 0x6000, scoped, tag = 'output window, operand 0']
    %7 = vsyncpa [#allocation3], 0
    %s8 = scalar_lea.sflag [#allocation3], 1
    %9 = vsyncpa %s8, 0
    %10 = vsyncpa [#allocation6], 0
    %s11 = scalar_lea.sflag [#allocation6], 1
    %12 = vsyncpa %s11, 0
    %13 = vsyncpa [#allocation4], 0
    %s14 = scalar_lea.sflag [#allocation4], 1
    %15 = vsyncpa %s14, 0
    loop: start=0, step=1, limit=4
    $region2: #{tpu_custom_call.1} parent=1 // loop_pre_header
      _
    $region3: #{tpu_custom_call.1} parent=1 // loop_header
      %s17 = sphi 0, %s21
      %p18 = scmp.ge.s32.totalorder %s17, 4
      %s27 = sphi 0, %s29
      %s30 = sphi 0, %s27
      %s31 = sphi 0, %s30
      %s47 = sphi 0, %s31
      %s53 = sphi 0, %s55
      %s56 = sphi 0, %s53
      %s57 = sphi 0, %s56
      %s73 = sphi 0, %s57
      %s79 = sphi 0, %s81
      %s82 = sphi 0, %s79
      %s83 = sphi 0, %s82
      %s99 = sphi 0, %s83
    $region4: #{tpu_custom_call.1} parent=1 // loop_header_branch
      %20 = sbr.rel (%p18) target = $region8
    $region5: #{tpu_custom_call.1} parent=1 // loop_body
      %s22 = ssub.s32 %s17, 1
      %s23 = ssub.s32 %s17, 2
      %s24 = sadd.s32 %s17, 1
      %s25 = ssub.s32 %s17, %s24
      %p26 = scmp.eq.s32.totalorder %s25, 0
      %s28 = sadd.s32 %s27, 1
      %s29 = scalar_select %p26, %s27, %s28
      %p32 = pneg %p26
      %p33 = scmp.eq.s32.totalorder %s17, 1
      %p34 = por %p32, %p33
      %p35 = scmp.ne.s32.totalorder %s27, %s30
      %p36 = scmp.eq.s32.totalorder %s17, 0
      %p37 = por %p35, %p36
      %p38 = scmp.ne.s32.totalorder %s27, %s30
      %p39 = scmp.eq.s32.totalorder %s22, 1
      %p40 = por %p38, %p39
      %p41 = scmp.ne.s32.totalorder %s30, %s31
      %p42 = scmp.eq.s32.totalorder %s22, 0
      %p43 = por %p41, %p42
      %p44 = scmp.ne.s32.totalorder %s30, %s31
      %p45 = scmp.eq.s32.totalorder %s23, 1
      %p46 = por %p44, %p45
      %p48 = scmp.ne.s32.totalorder %s31, %s47
      %p49 = scmp.eq.s32.totalorder %s23, 0
      %p50 = por %p48, %p49
      %s51 = ssub.s32 %s17, %s24
      %p52 = scmp.eq.s32.totalorder %s51, 0
      %s54 = sadd.s32 %s53, 1
      %s55 = scalar_select %p52, %s53, %s54
      %p58 = pneg %p52
      %p59 = scmp.eq.s32.totalorder %s17, 1
      %p60 = por %p58, %p59
      %p61 = scmp.ne.s32.totalorder %s53, %s56
      %p62 = scmp.eq.s32.totalorder %s17, 0
      %p63 = por %p61, %p62
      %p64 = scmp.ne.s32.totalorder %s53, %s56
      %p65 = scmp.eq.s32.totalorder %s22, 1
      %p66 = por %p64, %p65
      %p67 = scmp.ne.s32.totalorder %s56, %s57
      %p68 = scmp.eq.s32.totalorder %s22, 0
      %p69 = por %p67, %p68
      %p70 = scmp.ne.s32.totalorder %s56, %s57
      %p71 = scmp.eq.s32.totalorder %s23, 1
      %p72 = por %p70, %p71
      %p74 = scmp.ne.s32.totalorder %s57, %s73
      %p75 = scmp.eq.s32.totalorder %s23, 0
      %p76 = por %p74, %p75
      %s77 = ssub.s32 %s17, %s24
      %p78 = scmp.eq.s32.totalorder %s77, 0
      %s80 = sadd.s32 %s79, 1
      %s81 = scalar_select %p78, %s79, %s80
      %p84 = pneg %p78
      %p85 = scmp.eq.s32.totalorder %s17, 1
      %p86 = por %p84, %p85
      %p87 = scmp.ne.s32.totalorder %s79, %s82
      %p88 = scmp.eq.s32.totalorder %s17, 0
      %p89 = por %p87, %p88
      %p90 = scmp.ne.s32.totalorder %s79, %s82
      %p91 = scmp.eq.s32.totalorder %s22, 1
      %p92 = por %p90, %p91
      %p93 = scmp.ne.s32.totalorder %s82, %s83
      %p94 = scmp.eq.s32.totalorder %s22, 0
      %p95 = por %p93, %p94
      %p96 = scmp.ne.s32.totalorder %s82, %s83
      %p97 = scmp.eq.s32.totalorder %s23, 1
      %p98 = por %p96, %p97
      %p100 = scmp.ne.s32.totalorder %s83, %s99
      %p101 = scmp.eq.s32.totalorder %s23, 0
      %p102 = por %p100, %p101
      %p103 = scmp.le.s32.totalorder 1, %s17
      %p104 = scmp.lt.s32.totalorder %s17, 3
      %p105 = pnand %p103, %p104
      %p106 = pneg %p105
      // Predicated region
      $region9: #{tpu_custom_call.1} parent=5 // pred_check
        _
      $region10: #{tpu_custom_call.1} parent=5 // pred_check_branch
        %108 = sbr.rel (%p105) target = $region12
      $region11: #{tpu_custom_call.1} parent=5 // pred_region
        %s109 = ssub.s32 %s17, 1
      $region12: #{tpu_custom_call.1} parent=5 // pred_fallthru
        _
      %p110 = scmp.lt.s32.totalorder %s17, 2
      // Predicated region
      $region13: #{tpu_custom_call.1} parent=5 // pred_check
        %p111 = pneg %p110
      $region14: #{tpu_custom_call.1} parent=5 // pred_check_branch
        %113 = sbr.rel (%p111) target = $region16
      $region15: #{tpu_custom_call.1} parent=5 // pred_region
        // Predicated region
        $region17: #{tpu_custom_call.1} parent=15 // pred_check
          %p114 = pneg %p37
        $region18: #{tpu_custom_call.1} parent=15 // pred_check_branch
          %116 = sbr.rel (%p114) target = $region20
        $region19: #{tpu_custom_call.1} parent=15 // pred_region
          %s117 = sand.u32 %s27, 1
          %s118 = scalar_lea.sflag [#allocation3], %s117
          %s119 = sand.u32 %s27, 1
          %s120 = smul.addr %s119, 8
          %s121 = scalar_lea.vmem [#allocation2], %s120
          %123 = vsyncadd %s118, 0
          %s124 = smul.addr %s17, 8
          %s125 = scalar_lea.hbm %s0, %s124
          %s127 = sshll.u32 %s125, 4
          %s128 = int_to_ptr.hbm [resolvable:$true] %s127
          %s129 = sshll.u32 %s121, 4
          %s130 = int_to_ptr.vmem [resolvable:$true] %s129
          %132 = dma.hbm_to_vmem [thread:$0]  %s128, 128, %s130, %s118
        $region20: #{tpu_custom_call.1} parent=15 // pred_fallthru
          _
        // Predicated region
        $region21: #{tpu_custom_call.1} parent=15 // pred_check
          %p133 = pneg %p63
        $region22: #{tpu_custom_call.1} parent=15 // pred_check_branch
          %135 = sbr.rel (%p133) target = $region24
        $region23: #{tpu_custom_call.1} parent=15 // pred_region
          %s136 = sand.u32 %s53, 1
          %s137 = scalar_lea.sflag [#allocation6], %s136
          %s138 = sand.u32 %s53, 1
          %s139 = smul.addr %s138, 8
          %s140 = scalar_lea.vmem [#allocation5], %s139
          %142 = vsyncadd %s137, 0
          %s143 = smul.addr %s17, 8
          %s144 = scalar_lea.hbm %s1, %s143
          %s146 = sshll.u32 %s144, 4
          %s147 = int_to_ptr.hbm [resolvable:$true] %s146
          %s148 = sshll.u32 %s140, 4
          %s149 = int_to_ptr.vmem [resolvable:$true] %s148
          %151 = dma.hbm_to_vmem [thread:$0]  %s147, 128, %s149, %s137
        $region24: #{tpu_custom_call.1} parent=15 // pred_fallthru
          _
      $region16: #{tpu_custom_call.1} parent=5 // pred_fallthru
        _
      %p152 = scmp.le.s32.totalorder 1, %s17
      %p153 = scmp.lt.s32.totalorder %s17, 3
      %p154 = pnand %p152, %p153
      %p155 = pneg %p154
      // Predicated region
      $region25: #{tpu_custom_call.1} parent=5 // pred_check
        _
      $region26: #{tpu_custom_call.1} parent=5 // pred_check_branch
        %157 = sbr.rel (%p154) target = $region28
      $region27: #{tpu_custom_call.1} parent=5 // pred_region
        %s158 = ssub.s32 %s17, 1
        %s159 = sand.u32 %s30, 1
        %s160 = scalar_lea.sflag [#allocation3], %s159
        %s161 = sand.u32 %s30, 1
        %s162 = smul.addr %s161, 8
        %s163 = scalar_lea.vmem [#allocation2], %s162
        // Predicated region
        $region29: #{tpu_custom_call.1} parent=27 // pred_check
          %p164 = pneg %p43
        $region30: #{tpu_custom_call.1} parent=27 // pred_check_branch
          %166 = sbr.rel (%p164) target = $region32
        $region31: #{tpu_custom_call.1} parent=27 // pred_region
          %168 = dma.done %s160, 128
        $region32: #{tpu_custom_call.1} parent=27 // pred_fallthru
          _
        %s169 = sand.u32 %s56, 1
        %s170 = scalar_lea.sflag [#allocation6], %s169
        %s171 = sand.u32 %s56, 1
        %s172 = smul.addr %s171, 8
        %s173 = scalar_lea.vmem [#allocation5], %s172
        // Predicated region
        $region33: #{tpu_custom_call.1} parent=27 // pred_check
          %p174 = pneg %p69
        $region34: #{tpu_custom_call.1} parent=27 // pred_check_branch
          %176 = sbr.rel (%p174) target = $region36
        $region35: #{tpu_custom_call.1} parent=27 // pred_region
          %178 = dma.done %s170, 128
        $region36: #{tpu_custom_call.1} parent=27 // pred_fallthru
          _
        %s179 = sand.u32 %s30, 1
        %s180 = scalar_lea.sflag [#allocation3], %s179
        %s181 = sand.u32 %s30, 1
        %s182 = smul.addr %s181, 8
        %s183 = scalar_lea.vmem [#allocation2], %s182
        %p184 = pneg %p43
        %p185 = pneg %p40
        %s186 = sand.u32 %s56, 1
        %s187 = scalar_lea.sflag [#allocation6], %s186
        %s188 = sand.u32 %s56, 1
        %s189 = smul.addr %s188, 8
        %s190 = scalar_lea.vmem [#allocation5], %s189
        %p191 = pneg %p69
        %p192 = pneg %p66
        %p193 = pneg %p95
        %p194 = pneg %p92
        %s195 = sand.u32 %s82, 1
        %s196 = scalar_lea.sflag [#allocation4], %s195
        %s197 = sand.u32 %s82, 1
        %s198 = smul.addr %s197, 24
        %s199 = scalar_lea.vmem [#allocation7], %s198
        %v200 = vld [vmem:[%s163] sm:$0xff]
        %v201 = vld [vmem:[%s173] sm:$0xff]
        %v202 = vsub.f32 %v200, %v201
        %v203 = vmul.f32 %v202, %v202
        %v204 = vand.u32 2147483647, %v202
        %vm205 = vcmp.lt.f32.partialorder %v204, 1.0
        %v206 = vmul.f32 %v203, 0.5
        %v207 = vsub.f32 %v204, 0.5
        %v208 = vsel %vm205, %v206, %v207
        %v209 = vadd.f32 %v203, 0.0
        %v210 = vadd.f32 %v209, 0.0
        %v211 = vadd.f32 %v204, 0.0
        %v212 = vadd.f32 %v211, 0.0
        %v213 = vadd.f32 %v208, 0.0
        %v214 = vadd.f32 %v213, 0.0
        %215 = vst [vmem:[%s199] sm:$0xff] %v210
        %s216 = scalar_lea.vmem %s199, 8 [#allocation7]
        %217 = vst [vmem:[%s216] sm:$0xff] %v212
        %s218 = scalar_lea.vmem %s199, 16 [#allocation7]
        %219 = vst [vmem:[%s218] sm:$0xff] %v214
        %s220 = sand.u32 %s82, 1
        %s221 = scalar_lea.sflag [#allocation4], %s220
        %s222 = sand.u32 %s82, 1
        %s223 = smul.addr %s222, 24
        %s224 = scalar_lea.vmem [#allocation7], %s223
        // Predicated region
        $region37: #{tpu_custom_call.1} parent=27 // pred_check
          %p225 = pneg %p92
        $region38: #{tpu_custom_call.1} parent=27 // pred_check_branch
          %227 = sbr.rel (%p225) target = $region40
        $region39: #{tpu_custom_call.1} parent=27 // pred_region
          %229 = vsyncadd %s221, 0
          %s230 = smul.addr %s22, 3
          %s231 = smul.addr %s230, 8
          %s232 = scalar_lea.hbm %s2, %s231
          %s233 = sshll.u32 %s224, 4
          %s234 = int_to_ptr.vmem [resolvable:$true] %s233
          %s235 = sshll.u32 %s232, 4
          %s236 = int_to_ptr.hbm [resolvable:$true] %s235
          %241 = dma.vmem_to_hbm [thread:$0]  %s234, 384, %s236, %s221, 128, 128, 8
        $region40: #{tpu_custom_call.1} parent=27 // pred_fallthru
          _
      $region28: #{tpu_custom_call.1} parent=5 // pred_fallthru
        _
      %p242 = scmp.le.s32.totalorder 2, %s17
      // Predicated region
      $region41: #{tpu_custom_call.1} parent=5 // pred_check
        %p243 = pneg %p242
      $region42: #{tpu_custom_call.1} parent=5 // pred_check_branch
        %245 = sbr.rel (%p243) target = $region44
      $region43: #{tpu_custom_call.1} parent=5 // pred_region
        %s246 = ssub.s32 %s17, 2
        // Predicated region
        $region45: #{tpu_custom_call.1} parent=43 // pred_check
          %p247 = pneg %p98
        $region46: #{tpu_custom_call.1} parent=43 // pred_check_branch
          %249 = sbr.rel (%p247) target = $region48
        $region47: #{tpu_custom_call.1} parent=43 // pred_region
          %s250 = sand.u32 %s83, 1
          %s251 = scalar_lea.sflag [#allocation4], %s250
          %s252 = sand.u32 %s83, 1
          %s253 = smul.addr %s252, 24
          %s254 = scalar_lea.vmem [#allocation7], %s253
          %256 = dma.done %s251, 384
        $region48: #{tpu_custom_call.1} parent=43 // pred_fallthru
          _
      $region44: #{tpu_custom_call.1} parent=5 // pred_fallthru
        _
    $region6: #{tpu_custom_call.1} parent=1 // loop_footer
      %s21 = sadd.s32 1, %s17
    $region7: #{tpu_custom_call.1} parent=1 // loop_footer_branch
      %16 = sbr.rel target = $region3
    $region8: #{tpu_custom_call.1} parent=1 // loop_exit
      _
    %257 = vsyncpa [#allocation3], 1
    %s258 = scalar_lea.sflag [#allocation3], 1
    %259 = vsyncpa %s258, 1
    %260 = vsyncpa [#allocation6], 1
    %s261 = scalar_lea.sflag [#allocation6], 1
    %262 = vsyncpa %s261, 1
    %263 = vsyncpa [#allocation4], 1
    %s264 = scalar_lea.sflag [#allocation4], 1
    %265 = vsyncpa %s264, 1

</llo_original>
